<compile_context>
chip_gen: v6e
topology: v6e:2x2x1
jax: 0.10.0
libtpu: 0.0.40
codegen_flags: <defaults>
</compile_context>

<pallas_src>
import jax
import jax.numpy as jnp
from jax.experimental import pallas as pl
from jax.experimental.pallas import tpu as pltpu


def attention_kernel(x_ref, w_ref, b_ref, o_ref, m_ref, l_ref, acc_ref):
    # x_ref: (tb, ts, D) native-dtype input block.
    # w_ref: (1, D)      attention weight row (f32, cast to x dtype for VPU).
    # b_ref: (1,)        attention bias scalar in SMEM (f32).
    # o_ref: (tb, D)     attended output block (written on the last seq step).
    # m/l/acc: online-softmax running max / denom / weighted-sum (f32 VMEM).
    j = pl.program_id(1)

    @pl.when(j == 0)
    def _():
        m_ref[...] = jnp.full_like(m_ref, -jnp.inf)
        l_ref[...] = jnp.zeros_like(l_ref)
        acc_ref[...] = jnp.zeros_like(acc_ref)

    x = x_ref[...]                              # native dtype, no f32 slab copy
    w = w_ref[...].astype(x.dtype)              # (1, D), broadcasts over (tb, ts, D)
    b = b_ref[0]                                # scalar from SMEM

    # Lane-dense scores (tb, ts): VPU multiply, f32-accumulated lane reduce, EUP tanh.
    s = jnp.tanh(jnp.sum(x * w, axis=-1, dtype=jnp.float32) + b)

    # Online softmax over the sequence (grid axis 1), all in f32.
    m_prev = m_ref[...]                                          # (tb, 1)
    m_new = jnp.maximum(m_prev, jnp.max(s, axis=-1, keepdims=True))
    alpha = jnp.exp(m_prev - m_new)                              # (tb, 1)
    p = jnp.exp(s - m_new)                                       # (tb, ts)
    l_ref[...] = alpha * l_ref[...] + jnp.sum(p, axis=-1, keepdims=True)

    # Weighted sum over this sequence tile: native-dtype VPU product,
    # sublane-axis reduce with f32 accumulation (no degenerate M=1 matmul).
    weighted = jnp.sum(p.astype(x.dtype)[:, :, None] * x, axis=1,
                       dtype=jnp.float32)                        # (tb, D)
    acc_ref[...] = alpha * acc_ref[...] + weighted
    m_ref[...] = m_new

    @pl.when(j == pl.num_programs(1) - 1)
    def _():
        # Exact reciprocal: still an EUP op, effectively free in this kernel.
        o_ref[...] = (acc_ref[...] * pl.reciprocal(l_ref[...], approx=False)
                      ).astype(o_ref.dtype)


def _vmem_capacity_bytes():
    try:
        cap = getattr(pltpu.get_tpu_info(), "vmem_capacity_bytes", None)
        if cap:
            return int(cap)
    except Exception:
        pass
    return 64 << 20  # conservative default (v7x per-core VMEM)


def _choose_tiles(B, S, D, itemsize, block_budget_bytes):
    """Pick (tb, ts) so blocks respect TPU (8,128)-style constraints and stay
    inside the per-block VMEM budget.

    - output block (tb, D): tb is a multiple of 8 or equals B.
    - input block (tb, ts, D): ts is a multiple of 8 or equals S.
    """
    row_bytes = max(1, D * itemsize)
    # Sequence tiles: multiples of 8 that divide S, plus full-S fallback.
    ts_opts = [t for t in range(8, S, 8) if S % t == 0] + [S]

    if B <= 8:
        tb = B
        ts = max((t for t in ts_opts if tb * t * row_bytes <= block_budget_bytes),
                 default=min(ts_opts))
        return tb, ts

    tb = 8  # batch gets padded to a multiple of tb in the wrapper
    ts = max((t for t in ts_opts if tb * t * row_bytes <= block_budget_bytes),
             default=min(ts_opts))
    # Grow tb while in budget, keeping >=2 batch blocks for dual-TC parts.
    while (2 * tb * ts * row_bytes <= block_budget_bytes) and (4 * tb <= B):
        tb *= 2
    return tb, ts


def attention_forward(lstm_output, weight, bias):
    """lstm_output: (B, S, D); weight: PyTorch-style (1, D); bias: (1,)."""
    B, S, D = lstm_output.shape
    itemsize = jnp.dtype(lstm_output.dtype).itemsize

    vmem_cap = _vmem_capacity_bytes()
    block_budget = max(1 << 20, vmem_cap // 8)      # ~8 MiB on v7x, ~16 MiB on v5e/v6e
    tb, ts = _choose_tiles(B, S, D, itemsize, block_budget)

    # Pad the batch so every (tb, D) output block is full (unmasked stores,
    # no tb=1 fallback for awkward B).
    B_pad = pl.cdiv(B, tb) * tb
    x = lstm_output
    if B_pad != B:
        x = jnp.pad(x, ((0, B_pad - B), (0, 0), (0, 0)))

    w_row = weight.reshape(1, D).astype(jnp.float32)   # single row, no transpose
    b_vec = bias.reshape(1).astype(jnp.float32)        # scalar -> SMEM

    grid = (B_pad // tb, S // ts)

    # Generation-gated scoped-VMEM request: exact need + headroom, capped well
    # below physical capacity.
    need = (2 * tb * ts * D * itemsize          # double-buffered input block
            + 2 * tb * D * itemsize             # double-buffered output block
            + (2 * tb + tb * D) * 4             # f32 scratch (m, l, acc)
            + 2 * D * 4                         # weight row
            + (4 << 20))                        # compiler-internal headroom
    vmem_limit = int(min(max(need, 16 << 20), (vmem_cap * 3) // 4))

    cost = pl.CostEstimate(
        flops=4 * B * S * D,                    # score contraction + weighted sum
        transcendentals=2 * B * S,              # tanh + exp
        bytes_accessed=B * S * D * itemsize + B * D * itemsize + D * 4 + 4,
    )

    out = pl.pallas_call(
        attention_kernel,
        out_shape=jax.ShapeDtypeStruct((B_pad, D), lstm_output.dtype),
        grid_spec=pltpu.PrefetchScalarGridSpec(
            num_scalar_prefetch=0,
            grid=grid,
            in_specs=[
                pl.BlockSpec((tb, ts, D), lambda i, j: (i, j, 0)),
                pl.BlockSpec((1, D), lambda i, j: (0, 0)),
                pl.BlockSpec(memory_space=pltpu.MemorySpace.SMEM),
            ],
            out_specs=pl.BlockSpec((tb, D), lambda i, j: (i, 0)),
            scratch_shapes=[
                pltpu.VMEM((tb, 1), jnp.float32),   # running max
                pltpu.VMEM((tb, 1), jnp.float32),   # running denom
                pltpu.VMEM((tb, D), jnp.float32),   # running weighted sum
            ],
        ),
        compiler_params=pltpu.CompilerParams(
            dimension_semantics=("parallel", "arbitrary"),
            vmem_limit_bytes=vmem_limit,
        ),
        cost_estimate=cost,
    )(x, w_row, b_vec)

    return out[:B] if B_pad != B else out


def attention_reference(lstm_output, weight, bias):
    scores = jnp.tanh(lstm_output @ weight.T + bias)   # (B, S, 1)
    att = jax.nn.softmax(scores, axis=1)               # softmax over seq
    return jnp.sum(att * lstm_output, axis=1)          # (B, D)


if __name__ == "__main__":
    hidden_dim = 16
    B, S, D = 2, 8, hidden_dim * 2

    key = jax.random.PRNGKey(0)
    k_x, k_w, k_b = jax.random.split(key, 3)
    lstm_output = jax.random.normal(k_x, (B, S, D), dtype=jnp.float32)
    # nn.Linear(hidden_dim*2, 1): weight (1, D), bias (1,)
    bound = 1.0 / (D ** 0.5)
    weight = jax.random.uniform(k_w, (1, D), jnp.float32, -bound, bound)
    bias = jax.random.uniform(k_b, (1,), jnp.float32, -bound, bound)

    out = attention_forward(lstm_output, weight, bias)
    out = jax.block_until_ready(out)

    ref = attention_reference(lstm_output, weight, bias)
    assert out.shape == (B, D)
    assert jnp.allclose(out, ref, atol=1e-3, rtol=1e-3), float(jnp.max(jnp.abs(out - ref)))
    print("KERNEL_OK")
</pallas_src>

<mosaic_0001>
module attributes {stable_mosaic.version = 11 : i64} {
  func.func @attention_kernel(%arg0: i32, %arg1: i32, %arg2: memref<2x8x32xf32, #tpu.memory_space<vmem>>, %arg3: memref<1x32xf32, #tpu.memory_space<vmem>>, %arg4: memref<1xf32, #tpu.memory_space<smem>>, %arg5: memref<2x32xf32, #tpu.memory_space<vmem>>, %arg6: memref<2x1xf32, #tpu.memory_space<vmem>>, %arg7: memref<2x1xf32, #tpu.memory_space<vmem>>, %arg8: memref<2x32xf32, #tpu.memory_space<vmem>>) attributes {dimension_semantics = [#tpu.dimension_semantics<parallel>, #tpu.dimension_semantics<arbitrary>], iteration_bounds = array<i64: 1, 1>, scalar_prefetch = 0 : i64, scratch_operands = 3 : i64, tpu.core_type = #tpu.core_type<tc>, window_params = [{transform_indices = @transform_0, window_bounds = array<i64: 2, 8, 32>}, {pipeline_mode = #tpu.pipeline_mode<synchronous>, transform_indices = @transform_1, window_bounds = array<i64: 1, 32>}, {transform_indices = @transform_2, window_bounds = array<i64: 1>}, {transform_indices = @transform_3, window_bounds = array<i64: 2, 32>}]} {
    %c0_i32 = arith.constant 0 : i32
    %0 = arith.cmpi eq, %arg1, %c0_i32 : i32
    %1 = arith.extui %0 : i1 to i32
    %c0_i32_0 = arith.constant 0 : i32
    %2 = arith.cmpi ne, %1, %c0_i32_0 : i32
    scf.if %2 {
      %cst_23 = arith.constant 0xFF800000 : f32
      %41 = vector.broadcast %cst_23 : f32 to vector<2x1xf32>
      %c0_24 = arith.constant 0 : index
      %c0_25 = arith.constant 0 : index
      %42 = vector.load %arg6[%c0_24, %c0_25] : memref<2x1xf32, #tpu.memory_space<vmem>>, vector<2x1xf32>
      tpu.vector_store %arg6[%c0_24, %c0_25], %41 {strides = array<i32>} : memref<2x1xf32, #tpu.memory_space<vmem>>, vector<2x1xf32>,
      %cst_26 = arith.constant 0.000000e+00 : f32
      %43 = vector.broadcast %cst_26 : f32 to vector<2x1xf32>
      %c0_27 = arith.constant 0 : index
      %c0_28 = arith.constant 0 : index
      %44 = vector.load %arg7[%c0_27, %c0_28] : memref<2x1xf32, #tpu.memory_space<vmem>>, vector<2x1xf32>
      tpu.vector_store %arg7[%c0_27, %c0_28], %43 {strides = array<i32>} : memref<2x1xf32, #tpu.memory_space<vmem>>, vector<2x1xf32>,
      %cst_29 = arith.constant 0.000000e+00 : f32
      %45 = vector.broadcast %cst_29 : f32 to vector<2x32xf32>
      %c0_30 = arith.constant 0 : index
      %c0_31 = arith.constant 0 : index
      %46 = vector.load %arg8[%c0_30, %c0_31] : memref<2x32xf32, #tpu.memory_space<vmem>>, vector<2x32xf32>
      tpu.vector_store %arg8[%c0_30, %c0_31], %45 {strides = array<i32>} : memref<2x32xf32, #tpu.memory_space<vmem>>, vector<2x32xf32>,
    } else {
    }
    %c0 = arith.constant 0 : index
    %c0_1 = arith.constant 0 : index
    %c0_2 = arith.constant 0 : index
    %3 = vector.load %arg2[%c0, %c0_1, %c0_2] : memref<2x8x32xf32, #tpu.memory_space<vmem>>, vector<2x8x32xf32>
    %c0_3 = arith.constant 0 : index
    %c0_4 = arith.constant 0 : index
    %4 = vector.load %arg3[%c0_3, %c0_4] : memref<1x32xf32, #tpu.memory_space<vmem>>, vector<1x32xf32>
    %c0_5 = arith.constant 0 : index
    %5 = memref.load %arg4[%c0_5] : memref<1xf32, #tpu.memory_space<smem>>
    %6 = vector.shape_cast %4 : vector<1x32xf32> to vector<1x1x32xf32>
    %7 = vector.broadcast %6 : vector<1x1x32xf32> to vector<2x8x32xf32>
    %8 = arith.mulf %3, %7 : vector<2x8x32xf32>
    %cst = arith.constant dense<0.000000e+00> : vector<2x8xf32>
    %9 = vector.multi_reduction <add>, %8, %cst [2] : vector<2x8x32xf32> to vector<2x8xf32>
    %10 = vector.broadcast %5 : f32 to vector<2x8xf32>
    %11 = arith.addf %9, %10 : vector<2x8xf32>
    %12 = math.tanh %11 : vector<2x8xf32>
    %c0_6 = arith.constant 0 : index
    %c0_7 = arith.constant 0 : index
    %13 = vector.load %arg6[%c0_6, %c0_7] : memref<2x1xf32, #tpu.memory_space<vmem>>, vector<2x1xf32>
    %cst_8 = arith.constant dense<0xFF800000> : vector<2xf32>
    %14 = vector.multi_reduction <maximumf>, %12, %cst_8 [1] : vector<2x8xf32> to vector<2xf32>
    %15 = vector.shape_cast %14 : vector<2xf32> to vector<2x1xf32>
    %16 = arith.maximumf %13, %15 : vector<2x1xf32>
    %17 = arith.subf %13, %16 : vector<2x1xf32>
    %18 = math.exp %17 : vector<2x1xf32>
    %19 = vector.broadcast %16 : vector<2x1xf32> to vector<2x8xf32>
    %20 = arith.subf %12, %19 : vector<2x8xf32>
    %21 = math.exp %20 : vector<2x8xf32>
    %c0_9 = arith.constant 0 : index
    %c0_10 = arith.constant 0 : index
    %22 = vector.load %arg7[%c0_9, %c0_10] : memref<2x1xf32, #tpu.memory_space<vmem>>, vector<2x1xf32>
    %23 = arith.mulf %18, %22 : vector<2x1xf32>
    %cst_11 = arith.constant dense<0.000000e+00> : vector<2xf32>
    %24 = vector.multi_reduction <add>, %21, %cst_11 [1] : vector<2x8xf32> to vector<2xf32>
    %25 = vector.shape_cast %24 : vector<2xf32> to vector<2x1xf32>
    %26 = arith.addf %23, %25 : vector<2x1xf32>
    %c0_12 = arith.constant 0 : index
    %c0_13 = arith.constant 0 : index
    %27 = vector.load %arg7[%c0_12, %c0_13] : memref<2x1xf32, #tpu.memory_space<vmem>>, vector<2x1xf32>
    tpu.vector_store %arg7[%c0_12, %c0_13], %26 {strides = array<i32>} : memref<2x1xf32, #tpu.memory_space<vmem>>, vector<2x1xf32>,
    %28 = vector.shape_cast %21 : vector<2x8xf32> to vector<2x8x1xf32>
    %29 = vector.broadcast %28 : vector<2x8x1xf32> to vector<2x8x32xf32>
    %30 = arith.mulf %29, %3 : vector<2x8x32xf32>
    %cst_14 = arith.constant dense<0.000000e+00> : vector<2x32xf32>
    %31 = vector.multi_reduction <add>, %30, %cst_14 [1] : vector<2x8x32xf32> to vector<2x32xf32>
    %c0_15 = arith.constant 0 : index
    %c0_16 = arith.constant 0 : index
    %32 = vector.load %arg8[%c0_15, %c0_16] : memref<2x32xf32, #tpu.memory_space<vmem>>, vector<2x32xf32>
    %33 = vector.broadcast %18 : vector<2x1xf32> to vector<2x32xf32>
    %34 = arith.mulf %33, %32 : vector<2x32xf32>
    %35 = arith.addf %34, %31 : vector<2x32xf32>
    %c0_17 = arith.constant 0 : index
    %c0_18 = arith.constant 0 : index
    %36 = vector.load %arg8[%c0_17, %c0_18] : memref<2x32xf32, #tpu.memory_space<vmem>>, vector<2x32xf32>
    tpu.vector_store %arg8[%c0_17, %c0_18], %35 {strides = array<i32>} : memref<2x32xf32, #tpu.memory_space<vmem>>, vector<2x32xf32>,
    %c0_19 = arith.constant 0 : index
    %c0_20 = arith.constant 0 : index
    %37 = vector.load %arg6[%c0_19, %c0_20] : memref<2x1xf32, #tpu.memory_space<vmem>>, vector<2x1xf32>
    tpu.vector_store %arg6[%c0_19, %c0_20], %16 {strides = array<i32>} : memref<2x1xf32, #tpu.memory_space<vmem>>, vector<2x1xf32>,
    %c0_i32_21 = arith.constant 0 : i32
    %38 = arith.cmpi eq, %arg1, %c0_i32_21 : i32
    %39 = arith.extui %38 : i1 to i32
    %c0_i32_22 = arith.constant 0 : i32
    %40 = arith.cmpi ne, %39, %c0_i32_22 : i32
    scf.if %40 {
      %c0_23 = arith.constant 0 : index
      %c0_24 = arith.constant 0 : index
      %41 = vector.load %arg8[%c0_23, %c0_24] : memref<2x32xf32, #tpu.memory_space<vmem>>, vector<2x32xf32>
      %c0_25 = arith.constant 0 : index
      %c0_26 = arith.constant 0 : index
      %42 = vector.load %arg7[%c0_25, %c0_26] : memref<2x1xf32, #tpu.memory_space<vmem>>, vector<2x1xf32>
      %43 = tpu.reciprocal %42 : vector<2x1xf32> -> vector<2x1xf32>
      %44 = vector.broadcast %43 : vector<2x1xf32> to vector<2x32xf32>
      %45 = arith.mulf %41, %44 : vector<2x32xf32>
      %c0_27 = arith.constant 0 : index
      %c0_28 = arith.constant 0 : index
      %46 = vector.load %arg5[%c0_27, %c0_28] : memref<2x32xf32, #tpu.memory_space<vmem>>, vector<2x32xf32>
      tpu.vector_store %arg5[%c0_27, %c0_28], %45 {strides = array<i32>} : memref<2x32xf32, #tpu.memory_space<vmem>>, vector<2x32xf32>,
    } else {
    }
    return
  }
  func.func @transform_0(%arg0: i32, %arg1: i32) -> (i32, i32, i32) {
    %c0_i32 = arith.constant 0 : i32
    %c0_i32_0 = arith.constant 0 : i32
    return %arg0, %arg1, %c0_i32 : i32, i32, i32
  }
  func.func @transform_1(%arg0: i32, %arg1: i32) -> (i32, i32) {
    %c0_i32 = arith.constant 0 : i32
    %c0_i32_0 = arith.constant 0 : i32
    %c0_i32_1 = arith.constant 0 : i32
    return %c0_i32, %c0_i32_0 : i32, i32
  }
  func.func @transform_2(%arg0: i32, %arg1: i32) -> i32 {
    %c0_i32 = arith.constant 0 : i32
    %c0_i32_0 = arith.constant 0 : i32
    return %c0_i32 : i32
  }
  func.func @transform_3(%arg0: i32, %arg1: i32) -> (i32, i32) {
    %c0_i32 = arith.constant 0 : i32
    %c0_i32_0 = arith.constant 0 : i32
    return %arg0, %c0_i32 : i32, i32
  }
}

</mosaic_0001>

<llo_original>
// kernel: tpu_custom_call.1
$region0: #{tpu_custom_call.1}
  #allocation0 [shape = 'u32[]', space=smem, size = 0x4, offset = 0x4, fixed_abs, tag = 'smem constant byte address 0x4 - core index']
  #allocation1 [shape = 'u32[144,128]{1,0:T(1,128)}', space=vmem, size = 0x12000, scoped, tag = 'internal scratch']
  #allocation2 [shape = 'f32[2,1]{1,0:T(2,128)}', space=vmem, size = 0x400, scoped, tag = 'scratch operand']
  #allocation3 [shape = 'f32[2,1]{1,0:T(2,128)}', space=vmem, size = 0x400, scoped, tag = 'scratch operand']
  #allocation4 [shape = 'f32[2,32]{1,0:T(2,128)}', space=vmem, size = 0x400, scoped, tag = 'scratch operand']
  #allocation5 [shape = 'f32[1]{0:T(128)S(6)}', space=smem, size = 0x200, scoped, tag = 'scoped memory for tpu_custom_call.1']
  %s0 = inlined_call_operand.hbm [shape: f32[2,8,32], index: 0, kind: input, shape index: {}]
  %s1 = inlined_call_operand.vmem [shape: f32[1,32], index: 1, kind: input, shape index: {}]
  %s2 = inlined_call_operand.<no memory space> [shape: f32[1], index: 2, kind: input, shape index: {}]
  %s3 = inlined_call_operand.hbm [shape: f32[2,32], index: 3, kind: output, shape index: {}]
  %s4 = sld [smem:[#allocation0]]
  $region34: #{tpu_custom_call.1} parent=0
    _
  %s6 = ssub.s32 1, %s4
  %s7 = scalar_select 0, %s6, %s4
  %8 = sst [smem:[#allocation5]] %s2
  $region1: #{tpu_custom_call.1} parent=0
    #allocation6 [shape = 'u8[8192]{0}', space=vmem, size = 0x2000, scoped, tag = 'input window, operand 0, single buffered']
    #allocation7 [shape = 's32[1]{0}', space=sflag, size = 0x4, scoped, tag = 'scoped memory for tpu_custom_call.1']
    #allocation8 [shape = 's32[1]{0}', space=sflag, size = 0x4, scoped, tag = 'scoped memory for tpu_custom_call.1']
    #allocation9 [shape = 'u8[1024]{0}', space=vmem, size = 0x400, scoped, tag = 'output window, operand 0, single buffered']
    %9 = vsyncpa [#allocation7], 0
    %10 = vsyncpa [#allocation8], 0
    // Predicated region
    $region2: #{tpu_custom_call.1} parent=1 // pred_check
      _
    $region3: #{tpu_custom_call.1} parent=1 // pred_check_branch
      %12 = sbr.rel (0) target = $region5
    $region4: #{tpu_custom_call.1} parent=1 // pred_region
      %s14 = ssub.s32 256, 256
      %15 = vsyncadd [#allocation7], %s14
      %s16 = sshll.u32 [#allocation6], 4
      %s17 = int_to_ptr.vmem [resolvable:$true] %s16
      %22 = dma.hbm_to_vmem [thread:$0]  %s0, 256, %s17, [#allocation7], 128, 128, 8
    $region5: #{tpu_custom_call.1} parent=1 // pred_fallthru
      _
    // Predicated region
    $region6: #{tpu_custom_call.1} parent=1 // pred_check
      _
    $region7: #{tpu_custom_call.1} parent=1 // pred_check_branch
      %24 = sbr.rel (0) target = $region9
    $region8: #{tpu_custom_call.1} parent=1 // pred_region
      _
    $region9: #{tpu_custom_call.1} parent=1 // pred_fallthru
      _
    // Predicated region
    $region10: #{tpu_custom_call.1} parent=1 // pred_check
      _
    $region11: #{tpu_custom_call.1} parent=1 // pred_check_branch
      %26 = sbr.rel (0) target = $region13
    $region12: #{tpu_custom_call.1} parent=1 // pred_region
      _
    $region13: #{tpu_custom_call.1} parent=1 // pred_fallthru
      _
    // Predicated region
    $region14: #{tpu_custom_call.1} parent=1 // pred_check
      _
    $region15: #{tpu_custom_call.1} parent=1 // pred_check_branch
      %28 = sbr.rel (0) target = $region17
    $region16: #{tpu_custom_call.1} parent=1 // pred_region
      %29 = dma.done [#allocation7], 256
    $region17: #{tpu_custom_call.1} parent=1 // pred_fallthru
      _
    %p30 = scmp.eq.s32.totalorder 0, 0
    // Predicated region
    $region18: #{tpu_custom_call.1} parent=1 // pred_check
      %p31 = pneg %p30
    $region19: #{tpu_custom_call.1} parent=1 // pred_check_branch
      %33 = sbr.rel (%p31) target = $region21
    $region20: #{tpu_custom_call.1} parent=1 // pred_region
      %vm34 = vcmask 1024
      %35 = vst.msk [vmem:[#allocation2] sm:$0x3] %vm34, -inf
      %36 = vst.msk [vmem:[#allocation3] sm:$0x3] %vm34, 0.0
      %vm37 = vcmask 254976
      %38 = vst.msk [vmem:[#allocation4] sm:$0x3] %vm37, 0.0
    $region21: #{tpu_custom_call.1} parent=1 // pred_fallthru
      _
    %v39 = vld [vmem:[#allocation6] sm:$0xff]
    %v40 = vld [vmem:[#allocation6 + $0x8] sm:$0xff]
    %v41 = vld [vmem:[%s1] sm:$0x1]
    %s42 = sld [smem:[#allocation5]]
    %v44 = vlaneseq
    %v45 = vshrl.u32 %v44, 7
    %v46 = vsub.s32 0, %v45
    %v47 = vrot.slane %v41, %v46
    %v49 = vmul.f32 %v39, %v47
    %v50 = vmul.f32 %v40, %v47
    %vm51 = vcmask 261120
    %v52 = vsel %vm51, %v49, 0.0
    %53 = vadd.xlane.f32.xlu0 %v52
    %v54 = vpop.xlane.xlu0 %53
    %v55 = vsel %vm51, %v50, 0.0
    %56 = vadd.xlane.f32.xlu0 %v55
    %v57 = vpop.xlane.xlu0 %56
    %v58 = vstv %s42
    %v59 = vadd.f32 %v54, %v58
    %v60 = vadd.f32 %v57, %v58
    %v61 = vtanh.pop %v59
    %v62 = vtanh.pop %v60
    %v63 = vld [vmem:[#allocation2] sm:$0x3]
    %v66 = vlaneseq
    %v67 = vand.u32 %v66, 127
    %v68 = vlaneseq
    %v69 = vshrl.u32 %v68, 7
    %v70 = vsub.s32 %v67, %v69
    %v71 = vrot.slane %v61, %v70
    %v72 = vlaneseq
    %v73 = vshrl.u32 %v72, 7
    %v74 = vsub.s32 %v67, %v73
    %v75 = vrot.slane %v62, %v74
    %vm76 = vcmask 1041409
    %v77 = vsel %vm76, %v75, %v71
    %vm79 = vcmask 58368
    %v80 = vsel %vm79, %v77, -inf
    %81 = vmax.xlane.f32.xlu0 %v80
    %v82 = vpop.xlane.xlu0 %81
    %v83 = vmax.f32 %v63, %v82
    %v84 = vsub.f32 %v63, %v83
    %v85 = vmul.f32 %v84, 1.442695
    %v86 = vpow.pop %v85
    %88 = vset.pattern.permute.xlu0 0
    %89 = vperm.xlu0 %88, %v83
    %v90 = vpop.permute.xlu0 %89
    %v91 = vlaneseq
    %v92 = vshrl.u32 %v91, 7
    %v93 = vsub.s32 0, %v92
    %v94 = vrot.slane %v90, %v93
    %v95 = vlaneseq
    %v96 = vshrl.u32 %v95, 7
    %v97 = vsub.s32 1, %v96
    %v98 = vrot.slane %v90, %v97
    %v101 = vsub.f32 %v61, %v94
    %v102 = vsub.f32 %v62, %v98
    %v103 = vmul.f32 %v101, 1.442695
    %v104 = vpow.pop %v103
    %v105 = vmul.f32 %v102, 1.442695
    %v106 = vpow.pop %v105
    %v107 = vld [vmem:[#allocation3] sm:$0x3]
    %v108 = vmul.f32 %v86, %v107
    %111 = vset.pattern.permute.xlu0 0
    %112 = vperm.xlu0 %111, %v104
    %v113 = vpop.permute.xlu0 %112
    %114 = vset.pattern.permute.xlu0 0
    %115 = vperm.xlu0 %114, %v106
    %v116 = vpop.permute.xlu0 %115
    %v117 = vlaneseq
    %v118 = vshrl.u32 %v117, 7
    %v119 = vsub.s32 %v67, %v118
    %v120 = vrot.slane %v113, %v119
    %v121 = vlaneseq
    %v122 = vshrl.u32 %v121, 7
    %v123 = vsub.s32 %v67, %v122
    %v124 = vrot.slane %v116, %v123
    %v125 = vsel %vm76, %v124, %v120
    %v127 = vsel %vm79, %v125, 0.0
    %128 = vadd.xlane.f32.xlu0 %v127
    %v129 = vpop.xlane.xlu0 %128
    %v130 = vadd.f32 %v108, %v129
    %vm131 = vcmask 1024
    %132 = vst.msk [vmem:[#allocation3] sm:$0x3] %vm131, %v130
    %v135 = vmul.f32 %v113, %v39
    %v136 = vmul.f32 %v116, %v40
    %v137 = vsel %vm51, %v135, 0.0
    %v138 = vrot.slane %v137, 4
    %v139 = vadd.f32 %v137, %v138
    %v140 = vrot.slane %v139, 2
    %v141 = vadd.f32 %v139, %v140
    %v142 = vrot.slane %v141, 1
    %v143 = vadd.f32 %v141, %v142
    %v144 = vsel %vm51, %v136, 0.0
    %v145 = vrot.slane %v144, 4
    %v146 = vadd.f32 %v144, %v145
    %v147 = vrot.slane %v146, 2
    %v148 = vadd.f32 %v146, %v147
    %v149 = vrot.slane %v148, 1
    %v150 = vadd.f32 %v148, %v149
    %v151 = vld [vmem:[#allocation4] sm:$0x3]
    %153 = vset.pattern.permute.xlu0 0
    %154 = vperm.xlu0 %153, %v86
    %v155 = vpop.permute.xlu0 %154
    %v157 = vmul.f32 %v155, %v151
    %v160 = vsel %vm76, %v150, %v143
    %v162 = vadd.f32 %v157, %v160
    %vm163 = vcmask 254976
    %164 = vst.msk [vmem:[#allocation4] sm:$0x3] %vm163, %v162
    %165 = vst.msk [vmem:[#allocation2] sm:$0x3] %vm131, %v83
    // Predicated region
    $region22: #{tpu_custom_call.1} parent=1 // pred_check
      %p166 = pneg %p30
    $region23: #{tpu_custom_call.1} parent=1 // pred_check_branch
      %168 = sbr.rel (%p166) target = $region25
    $region24: #{tpu_custom_call.1} parent=1 // pred_region
      %v169 = vld [vmem:[#allocation4] sm:$0x3]
      %v170 = vld [vmem:[#allocation3] sm:$0x3]
      %v171 = vrcp.pop %v170
      %173 = vset.pattern.permute.xlu0 0
      %174 = vperm.xlu0 %173, %v171
      %v175 = vpop.permute.xlu0 %174
      %v177 = vmul.f32 %v169, %v175
      %178 = vst.msk [vmem:[#allocation9] sm:$0x3] %vm163, %v177
    $region25: #{tpu_custom_call.1} parent=1 // pred_fallthru
      _
    // Predicated region
    $region26: #{tpu_custom_call.1} parent=1 // pred_check
      _
    $region27: #{tpu_custom_call.1} parent=1 // pred_check_branch
      %180 = sbr.rel (0) target = $region29
    $region28: #{tpu_custom_call.1} parent=1 // pred_region
      %s182 = ssub.s32 32, 32
      %183 = vsyncadd [#allocation8], %s182
      %s185 = sshll.u32 [#allocation9], 4
      %s186 = int_to_ptr.vmem [resolvable:$true] %s185
      %188 = dma.vmem_to_hbm [thread:$0]  %s186, 32, %s3, [#allocation8]
    $region29: #{tpu_custom_call.1} parent=1 // pred_fallthru
      _
    // Predicated region
    $region30: #{tpu_custom_call.1} parent=1 // pred_check
      _
    $region31: #{tpu_custom_call.1} parent=1 // pred_check_branch
      %190 = sbr.rel (0) target = $region33
    $region32: #{tpu_custom_call.1} parent=1 // pred_region
      %191 = dma.done [#allocation8], 32
    $region33: #{tpu_custom_call.1} parent=1 // pred_fallthru
      _
    %192 = vsyncpa [#allocation7], 1
    %193 = vsyncpa [#allocation8], 1

</llo_original>
